<compile_context>
chip_gen: v7x
topology: tpu7x:2x2x1
jax: 0.10.0
libtpu: 0.0.40
codegen_flags: <defaults>
</compile_context>

<pallas_src>
import functools
import math

import jax
import jax.numpy as jnp
from jax.experimental import pallas as pl
from jax.experimental.pallas import tpu as pltpu


def make_positional_encoding(d_model: int, max_len: int = 128,
                             dtype=jnp.float32) -> jnp.ndarray:
    """Sinusoidal table, shape (max_len, d_model) (PyTorch buffer with the size-1
    batch dim squeezed).  Handles odd d_model gracefully."""
    position = jnp.arange(max_len, dtype=jnp.float32)[:, None]            # (max_len, 1)
    div_term = jnp.exp(jnp.arange(0, d_model, 2, dtype=jnp.float32)
                       * (-math.log(10000.0) / d_model))                  # (ceil(d/2),)
    angles = position * div_term                                          # (max_len, ceil(d/2))
    pe = jnp.zeros((max_len, d_model), dtype=jnp.float32)
    pe = pe.at[:, 0::2].set(jnp.sin(angles))
    pe = pe.at[:, 1::2].set(jnp.cos(angles[:, : d_model // 2]))           # odd d_model safe
    return pe.astype(dtype)


def _add_pe_kernel(x_ref, pe_ref, o_ref, *, tp: int, batch: int):
    """x_ref / o_ref: (tp*batch, D) row tile of the flattened activations
    (rows are position-major, batch-minor).  pe_ref: full (S_pad, D) table kept
    resident in VMEM (constant block index); slice the tp rows for this tile."""
    i = pl.program_id(0)
    d = x_ref.shape[-1]
    start = pl.multiple_of(i * tp, tp)
    pe = pe_ref[pl.ds(start, tp), :]                     # (tp, d) -- tiny, already in VMEM
    if batch == 1:
        o_ref[...] = x_ref[...] + pe
    else:
        # Repeat each position's encoding across its `batch` consecutive rows.
        pe_rows = jnp.broadcast_to(pe[:, None, :], (tp, batch, d)).reshape(tp * batch, d)
        o_ref[...] = x_ref[...] + pe_rows


def _choose_tile_positions(S, B, D, itemsize, target_tile_bytes):
    """Sequence positions per tile.  Rows per tile (tp*B) must be a multiple of
    8 (sublane tiling) unless a single tile spans the whole flattened array."""
    pos_unit = 8 // math.gcd(8, B)                 # == lcm(8, B) // B  (tp granularity)
    bytes_per_pos = max(1, B * D * itemsize)
    tp = (target_tile_bytes // bytes_per_pos) // pos_unit * pos_unit
    tp = max(pos_unit, tp)
    if tp < S:
        return tp
    # Whole sequence fits in one tile: split so the grid has >= 2 steps
    # (overlap DMA with compute; let both v7x TensorCores work) when possible.
    half = ((S // 2) // pos_unit) * pos_unit
    return half if half >= pos_unit else S          # S => single full-extent tile


def positional_encoding_forward(x: jnp.ndarray, pe_table: jnp.ndarray, *,
                                use_pallas=None, in_place: bool = False,
                                target_tile_bytes: int = 1 << 20) -> jnp.ndarray:
    """x: (S, B, D); pe_table: (max_len, D).  Returns x + pe[:S] broadcast over B."""
    S, B, D = x.shape
    max_len, d_model = pe_table.shape
    if d_model != D:
        raise ValueError(f"d_model mismatch: x has {D}, pe has {d_model}")
    if S > max_len:
        raise ValueError(f"sequence length {S} exceeds pe max_len {max_len}")
    pe_table = pe_table.astype(x.dtype)   # bf16 activations => bf16 add, half the HBM traffic

    if use_pallas is None:
        # Tiny activations: a fused XLA add beats any pallas_call launch.
        use_pallas = x.size * x.dtype.itemsize >= (1 << 20)
    if not use_pallas:
        return x + pe_table[:S][:, None, :]

    itemsize = x.dtype.itemsize
    tp = _choose_tile_positions(S, B, D, itemsize, target_tile_bytes)
    num_tiles = pl.cdiv(S, tp)
    tr = tp * B                                   # rows per tile in the flattened view
    S_pad = num_tiles * tp

    # pe rows the kernel needs, as one constant-index block: DMA'd to VMEM once,
    # re-used across every grid step (no per-step pe re-fetch, no wrapper pe[:S]
    # feeding the hot loop).  Zero-pad so the last (masked) tile never reads OOB.
    if S_pad <= max_len:
        pe_in = pe_table[:S_pad]
    else:
        pe_in = jnp.pad(pe_table, ((0, S_pad - max_len), (0, 0)))

    # Free reshape (contiguous): rows are position-major, batch-minor.  The
    # sublane axis is now S*B (dense for any batch size); lanes are d_model
    # (dense/unmasked stores whenever d_model is a multiple of 128).
    x_rows = x.reshape(S * B, D)

    out_rows = pl.pallas_call(
        functools.partial(_add_pe_kernel, tp=tp, batch=B),
        out_shape=jax.ShapeDtypeStruct((S * B, D), x.dtype),
        grid=(num_tiles,),
        in_specs=[
            pl.BlockSpec((tr, D), lambda i: (i, 0)),       # x row tile (double-buffered)
            pl.BlockSpec((S_pad, D), lambda i: (0, 0)),    # resident pe (constant index)
        ],
        out_specs=pl.BlockSpec((tr, D), lambda i: (i, 0)),
        # Write the result into x's buffer when the caller donates x at the jit
        # boundary; otherwise XLA inserts a defensive copy (still correct).
        input_output_aliases={0: 0} if in_place else {},
        compiler_params=pltpu.CompilerParams(
            dimension_semantics=("parallel",),
        ),
    )(x_rows, pe_in)
    return out_rows.reshape(S, B, D)


if __name__ == "__main__":
    # Small shapes consistent with the module: seq=8, batch=2, d_model=32.
    S, B, D = 8, 2, 32
    MAX_LEN = 128

    key = jax.random.PRNGKey(0)
    x = jax.random.normal(key, (S, B, D), dtype=jnp.float32)
    pe = make_positional_encoding(D, MAX_LEN)

    # Reference (plain JAX, same math as the PyTorch forward), computed before
    # the kernel so the in-place path may safely alias x's buffer.
    ref = x + pe[:S][:, None, :]

    # Force the Pallas path so the kernel is exercised at these toy shapes;
    # production dispatch (use_pallas=None) hands ~2 KiB adds to fused XLA.
    # In real use, add donate_argnums=(0,) here so input_output_aliases lands
    # the output in x's HBM buffer without a defensive copy.
    fwd = jax.jit(functools.partial(positional_encoding_forward,
                                    use_pallas=True, in_place=True))
    out = jax.block_until_ready(fwd(x, pe))

    assert out.shape == (S, B, D)
    assert jnp.allclose(out, ref, atol=1e-6), "mismatch vs reference"
    print("KERNEL_OK")
</pallas_src>

<mosaic_0001>
module attributes {stable_mosaic.version = 11 : i64} {
  func.func @_add_pe_kernel(%arg0: i32, %arg1: memref<8x32xf32, #tpu.memory_space<vmem>>, %arg2: memref<8x32xf32, #tpu.memory_space<vmem>>, %arg3: memref<8x32xf32, #tpu.memory_space<vmem>>) attributes {dimension_semantics = [#tpu.dimension_semantics<parallel>], iteration_bounds = array<i64: 2>, scalar_prefetch = 0 : i64, scratch_operands = 0 : i64, tpu.core_type = #tpu.core_type<tc>, window_params = [{transform_indices = @transform_0, window_bounds = array<i64: 8, 32>}, {pipeline_mode = #tpu.pipeline_mode<synchronous>, transform_indices = @transform_1, window_bounds = array<i64: 8, 32>}, {transform_indices = @transform_2, window_bounds = array<i64: 8, 32>}]} {
    %c4_i32 = arith.constant 4 : i32
    %0 = arith.muli %arg0, %c4_i32 : i32
    %1 = tpu.assume_multiple %0, 4 : i32
    %2 = arith.index_cast %1 : i32 to index
    %c0 = arith.constant 0 : index
    %3 = vector.load %arg2[%2, %c0] : memref<8x32xf32, #tpu.memory_space<vmem>>, vector<4x32xf32>
    %4 = vector.shape_cast %3 : vector<4x32xf32> to vector<4x1x32xf32>
    %5 = vector.shape_cast %4 : vector<4x1x32xf32> to vector<4x1x32xf32>
    %6 = vector.broadcast %5 : vector<4x1x32xf32> to vector<4x2x32xf32>
    %7 = vector.shape_cast %6 : vector<4x2x32xf32> to vector<8x32xf32>
    %c0_0 = arith.constant 0 : index
    %c0_1 = arith.constant 0 : index
    %8 = vector.load %arg1[%c0_0, %c0_1] : memref<8x32xf32, #tpu.memory_space<vmem>>, vector<8x32xf32>
    %9 = arith.addf %8, %7 : vector<8x32xf32>
    %c0_2 = arith.constant 0 : index
    %c0_3 = arith.constant 0 : index
    %10 = vector.load %arg3[%c0_2, %c0_3] : memref<8x32xf32, #tpu.memory_space<vmem>>, vector<8x32xf32>
    tpu.vector_store %arg3[%c0_2, %c0_3], %9 {strides = array<i32>} : memref<8x32xf32, #tpu.memory_space<vmem>>, vector<8x32xf32>,
    return
  }
  func.func @transform_0(%arg0: i32) -> (i32, i32) {
    %c0_i32 = arith.constant 0 : i32
    %c0_i32_0 = arith.constant 0 : i32
    return %arg0, %c0_i32 : i32, i32
  }
  func.func @transform_1(%arg0: i32) -> (i32, i32) {
    %c0_i32 = arith.constant 0 : i32
    %c0_i32_0 = arith.constant 0 : i32
    %c0_i32_1 = arith.constant 0 : i32
    return %c0_i32, %c0_i32_0 : i32, i32
  }
  func.func @transform_2(%arg0: i32) -> (i32, i32) {
    %c0_i32 = arith.constant 0 : i32
    %c0_i32_0 = arith.constant 0 : i32
    return %arg0, %c0_i32 : i32, i32
  }
}

</mosaic_0001>

<llo_original>
// kernel: positional_encoding_forward.1
$region0: #{positional_encoding_forward.1}
  #allocation0 [shape = 'u32[]', space=smem, size = 0x4, offset = 0x4, fixed_abs, tag = 'smem constant byte address 0x4 - core index']
  #allocation1 [shape = 'u32[144,128]{1,0:T(1,128)}', space=vmem, size = 0x12000, scoped, tag = 'internal scratch']
  %s0 = inlined_call_operand.vmem [shape: f32[16,32], index: 0, kind: input, shape index: {}, may-alias: {0,2}]
  %s1 = inlined_call_operand.vmem [shape: f32[8,32], index: 1, kind: input, shape index: {}]
  %s2 = inlined_call_operand.vmem [shape: f32[16,32], index: 2, kind: output, shape index: {}, may-alias: {0,2}]
  %s3 = sld [smem:[#allocation0]]
  $region41: #{positional_encoding_forward.1} parent=0
    _
  %s5 = ssub.s32 1, %s3
  %s6 = scalar_select 0, %s5, %s3
  loop: start=0, step=1, limit=4
  $region2: #{positional_encoding_forward.1} parent=0 // loop_pre_header
    _
  $region3: #{positional_encoding_forward.1} parent=0 // loop_header
    %s8 = sphi 0, %s12
    %p9 = scmp.ge.s32.totalorder %s8, 4
    %s18 = sphi 0, %s20
    %s21 = sphi 0, %s18
    %s22 = sphi 0, %s21
    %s38 = sphi 0, %s22
    %s42 = sphi 0, %s42
    %s44 = sphi 0, %s42
    %s45 = sphi 0, %s44
    %s59 = sphi 0, %s45
    %s65 = sphi 0, %s67
    %s68 = sphi 0, %s65
    %s69 = sphi 0, %s68
    %s85 = sphi 0, %s69
  $region4: #{positional_encoding_forward.1} parent=0 // loop_header_branch
    %11 = sbr.rel (%p9) target = $region8
  $region5: #{positional_encoding_forward.1} parent=0 // loop_body
    %s13 = ssub.s32 %s8, 1
    %s14 = ssub.s32 %s8, 2
    %s15 = sadd.s32 %s8, 1
    %s16 = ssub.s32 %s8, %s15
    %p17 = scmp.eq.s32.totalorder %s16, 0
    %s19 = sadd.s32 %s18, 1
    %s20 = scalar_select %p17, %s18, %s19
    %p23 = pneg %p17
    %p24 = scmp.eq.s32.totalorder %s8, 1
    %p25 = por %p23, %p24
    %p26 = scmp.ne.s32.totalorder %s18, %s21
    %p27 = scmp.eq.s32.totalorder %s8, 0
    %p28 = por %p26, %p27
    %p29 = scmp.ne.s32.totalorder %s18, %s21
    %p30 = scmp.eq.s32.totalorder %s13, 1
    %p31 = por %p29, %p30
    %p32 = scmp.ne.s32.totalorder %s21, %s22
    %p33 = scmp.eq.s32.totalorder %s13, 0
    %p34 = por %p32, %p33
    %p35 = scmp.ne.s32.totalorder %s21, %s22
    %p36 = scmp.eq.s32.totalorder %s14, 1
    %p37 = por %p35, %p36
    %p39 = scmp.ne.s32.totalorder %s22, %s38
    %p40 = scmp.eq.s32.totalorder %s14, 0
    %p41 = por %p39, %p40
    %s43 = sadd.s32 %s42, 1
    %p46 = scmp.eq.s32.totalorder %s8, 1
    %p47 = scmp.ne.s32.totalorder %s42, %s44
    %p48 = scmp.eq.s32.totalorder %s8, 0
    %p49 = por %p47, %p48
    %p50 = scmp.ne.s32.totalorder %s42, %s44
    %p51 = scmp.eq.s32.totalorder %s13, 1
    %p52 = por %p50, %p51
    %p53 = scmp.ne.s32.totalorder %s44, %s45
    %p54 = scmp.eq.s32.totalorder %s13, 0
    %p55 = por %p53, %p54
    %p56 = scmp.ne.s32.totalorder %s44, %s45
    %p57 = scmp.eq.s32.totalorder %s14, 1
    %p58 = por %p56, %p57
    %p60 = scmp.ne.s32.totalorder %s45, %s59
    %p61 = scmp.eq.s32.totalorder %s14, 0
    %p62 = por %p60, %p61
    %s63 = ssub.s32 %s8, %s15
    %p64 = scmp.eq.s32.totalorder %s63, 0
    %s66 = sadd.s32 %s65, 1
    %s67 = scalar_select %p64, %s65, %s66
    %p70 = pneg %p64
    %p71 = scmp.eq.s32.totalorder %s8, 1
    %p72 = por %p70, %p71
    %p73 = scmp.ne.s32.totalorder %s65, %s68
    %p74 = scmp.eq.s32.totalorder %s8, 0
    %p75 = por %p73, %p74
    %p76 = scmp.ne.s32.totalorder %s65, %s68
    %p77 = scmp.eq.s32.totalorder %s13, 1
    %p78 = por %p76, %p77
    %p79 = scmp.ne.s32.totalorder %s68, %s69
    %p80 = scmp.eq.s32.totalorder %s13, 0
    %p81 = por %p79, %p80
    %p82 = scmp.ne.s32.totalorder %s68, %s69
    %p83 = scmp.eq.s32.totalorder %s14, 1
    %p84 = por %p82, %p83
    %p86 = scmp.ne.s32.totalorder %s69, %s85
    %p87 = scmp.eq.s32.totalorder %s14, 0
    %p88 = por %p86, %p87
    %p89 = scmp.le.s32.totalorder 1, %s8
    %p90 = scmp.lt.s32.totalorder %s8, 3
    %p91 = pnand %p89, %p90
    %p92 = pneg %p91
    // Predicated region
    $region9: #{positional_encoding_forward.1} parent=5 // pred_check
      _
    $region10: #{positional_encoding_forward.1} parent=5 // pred_check_branch
      %94 = sbr.rel (%p91) target = $region12
    $region11: #{positional_encoding_forward.1} parent=5 // pred_region
      %s95 = ssub.s32 %s8, 1
      // Predicated region
      $region13: #{positional_encoding_forward.1} parent=11 // pred_check
        %p96 = pneg %p55
      $region14: #{positional_encoding_forward.1} parent=11 // pred_check_branch
        %98 = sbr.rel (%p96) target = $region16
      $region15: #{positional_encoding_forward.1} parent=11 // pred_region
        _
      $region16: #{positional_encoding_forward.1} parent=11 // pred_fallthru
        _
    $region12: #{positional_encoding_forward.1} parent=5 // pred_fallthru
      _
    %p99 = scmp.lt.s32.totalorder %s8, 2
    // Predicated region
    $region17: #{positional_encoding_forward.1} parent=5 // pred_check
      %p100 = pneg %p99
    $region18: #{positional_encoding_forward.1} parent=5 // pred_check_branch
      %102 = sbr.rel (%p100) target = $region20
    $region19: #{positional_encoding_forward.1} parent=5 // pred_region
      // Predicated region
      $region21: #{positional_encoding_forward.1} parent=19 // pred_check
        %p103 = pneg %p28
      $region22: #{positional_encoding_forward.1} parent=19 // pred_check_branch
        %105 = sbr.rel (%p103) target = $region24
      $region23: #{positional_encoding_forward.1} parent=19 // pred_region
        %p106 = scmp.lt.s32.totalorder %s8, 1
        %s107 = scalar_select %p106, %s8, 1
        %s108 = smul.addr %s107, 8
        %s109 = scalar_lea.vmem %s0, %s108
      $region24: #{positional_encoding_forward.1} parent=19 // pred_fallthru
        _
    $region20: #{positional_encoding_forward.1} parent=5 // pred_fallthru
      _
    %p110 = scmp.le.s32.totalorder 1, %s8
    %p111 = scmp.lt.s32.totalorder %s8, 3
    %p112 = pnand %p110, %p111
    %p113 = pneg %p112
    // Predicated region
    $region25: #{positional_encoding_forward.1} parent=5 // pred_check
      _
    $region26: #{positional_encoding_forward.1} parent=5 // pred_check_branch
      %115 = sbr.rel (%p112) target = $region28
    $region27: #{positional_encoding_forward.1} parent=5 // pred_region
      %s116 = ssub.s32 %s8, 1
      %p117 = scmp.lt.s32.totalorder %s13, 1
      %s118 = scalar_select %p117, %s13, 1
      %s119 = smul.addr %s118, 8
      %s120 = scalar_lea.vmem %s0, %s119
      %p121 = pneg %p34
      %p122 = pneg %p31
      %p123 = pneg %p55
      %p124 = pneg %p52
      %p125 = pneg %p81
      %p126 = pneg %p78
      %p127 = scmp.lt.s32.totalorder %s13, 1
      %s128 = scalar_select %p127, %s13, 1
      %s129 = smul.addr %s128, 8
      %s130 = scalar_lea.vmem %s2, %s129
      %p131 = scmp.lt.s32.totalorder %s13, 1
      %s132 = scalar_select %p131, %s13, 1
      %s133 = smul.addr %s132, 8
      %s134 = scalar_lea.vmem %s0, %s133
      %p135 = scmp.lt.s32.totalorder %s13, 1
      %s136 = scalar_select %p135, %s13, 1
      %s137 = smul.addr %s136, 8
      %s138 = scalar_lea.vmem %s2, %s137
      %s139 = smul.u32 %s13, 4
      %s140 = scalar_lea.vmem %s1, %s139
      %v141 = vld [vmem:[%s140] sm:$0xf]
      %v144 = vunpack.c.l.s4 1966171168
      %v145 = vunpack.c.0.s8 %v144
      %v146 = vlaneseq
      %v147 = vshrl.u32 %v146, 7
      %v148 = vsub.s32 %v145, %v147
      %v149 = vrot.slane %v141, %v148
      %v150 = vcombine.high %v149, %v149
      %v152 = vunpack.c.l.s4 1966171168
      %v153 = vunpack.c.0.s8 %v152
      %v154 = vlaneseq
      %v155 = vshrl.u32 %v154, 7
      %v156 = vsub.s32 %v153, %v155
      %v157 = vrot.slane %v149, %v156
      %v159 = vunpack.c.l.s4 1966171168
      %v160 = vunpack.c.0.s8 %v159
      %v161 = vlaneseq
      %v162 = vshrl.u32 %v161, 7
      %v163 = vsub.s32 %v160, %v162
      %v164 = vrot.slane %v150, %v163
      %v165 = vcombine.high %v157, %v157
      %v166 = vcombine.high %v164, %v164
      %v167 = vlaneseq
      %v168 = vshrl.u32 %v167, 7
      %v169 = vsub.s32 0, %v168
      %v170 = vrot.slane %v157, %v169
      %v171 = vlaneseq
      %v172 = vshrl.u32 %v171, 7
      %v173 = vsub.s32 0, %v172
      %v174 = vrot.slane %v164, %v173
      %v175 = vlaneseq
      %v176 = vshrl.u32 %v175, 7
      %v177 = vsub.s32 0, %v176
      %v178 = vrot.slane %v165, %v177
      %v179 = vlaneseq
      %v180 = vshrl.u32 %v179, 7
      %v181 = vsub.s32 0, %v180
      %v182 = vrot.slane %v166, %v181
      %v183 = vld [vmem:[%s134] sm:$0xff]
      %v184 = vcombine.low %v170, %v174
      %v185 = vcombine.low %v178, %v182
      %v187 = vunpack.c.l.s4 1983009808
      %v188 = vunpack.c.0.s8 %v187
      %v189 = vlaneseq
      %v190 = vshrl.u32 %v189, 7
      %v191 = vsub.s32 %v188, %v190
      %v192 = vrot.slane %v184, %v191
      %v194 = vunpack.c.l.s4 1983009808
      %v195 = vunpack.c.0.s8 %v194
      %v196 = vlaneseq
      %v197 = vshrl.u32 %v196, 7
      %v198 = vsub.s32 %v195, %v197
      %v199 = vrot.slane %v185, %v198
      %v200 = vcombine.low %v192, %v199
      %v202 = vadd.f32 %v183, %v200
      %vm203 = vcmask 261120
      %204 = vst.msk [vmem:[%s138] sm:$0xff] %vm203, %v202
      %p205 = scmp.lt.s32.totalorder %s13, 1
      %s206 = scalar_select %p205, %s13, 1
      %s207 = smul.addr %s206, 8
      %s208 = scalar_lea.vmem %s2, %s207
      // Predicated region
      $region29: #{positional_encoding_forward.1} parent=27 // pred_check
        %p209 = pneg %p78
      $region30: #{positional_encoding_forward.1} parent=27 // pred_check_branch
        %211 = sbr.rel (%p209) target = $region32
      $region31: #{positional_encoding_forward.1} parent=27 // pred_region
        _
      $region32: #{positional_encoding_forward.1} parent=27 // pred_fallthru
        _
    $region28: #{positional_encoding_forward.1} parent=5 // pred_fallthru
      _
    %p212 = scmp.le.s32.totalorder 2, %s8
    // Predicated region
    $region33: #{positional_encoding_forward.1} parent=5 // pred_check
      %p213 = pneg %p212
    $region34: #{positional_encoding_forward.1} parent=5 // pred_check_branch
      %215 = sbr.rel (%p213) target = $region36
    $region35: #{positional_encoding_forward.1} parent=5 // pred_region
      %s216 = ssub.s32 %s8, 2
      // Predicated region
      $region37: #{positional_encoding_forward.1} parent=35 // pred_check
        %p217 = pneg %p84
      $region38: #{positional_encoding_forward.1} parent=35 // pred_check_branch
        %219 = sbr.rel (%p217) target = $region40
      $region39: #{positional_encoding_forward.1} parent=35 // pred_region
        %p220 = scmp.lt.s32.totalorder %s14, 1
        %s221 = scalar_select %p220, %s14, 1
        %s222 = smul.addr %s221, 8
        %s223 = scalar_lea.vmem %s2, %s222
      $region40: #{positional_encoding_forward.1} parent=35 // pred_fallthru
        _
    $region36: #{positional_encoding_forward.1} parent=5 // pred_fallthru
      _
  $region6: #{positional_encoding_forward.1} parent=0 // loop_footer
    %s12 = sadd.s32 1, %s8
  $region7: #{positional_encoding_forward.1} parent=0 // loop_footer_branch
    %7 = sbr.rel target = $region3
  $region8: #{positional_encoding_forward.1} parent=0 // loop_exit
    _

</llo_original>
